<compile_context>
chip_gen: v7x
topology: tpu7x:2x2x1
jax: 0.10.0
libtpu: 0.0.40
codegen_flags: <defaults>
</compile_context>

<pallas_src>
import jax
import jax.numpy as jnp
from jax.experimental import pallas as pl
from jax.experimental.pallas import tpu as pltpu


# ----------------------------- Pallas kernel -------------------------------

def _focus_conv_kernel(x_ref, w_ref, shift_ref, o_ref):
    # x_ref:     (1, K, tm)  bf16   (lane axis = spatial M)
    # w_ref:     (Cout, K)   bf16   (BN scale already folded in)
    # shift_ref: (Cout, 1)   f32    (folded BN shift)
    # o_ref:     (1, Cout, tm) bf16 (lane-dense, no channel padding)
    y = jnp.dot(w_ref[...], x_ref[0], preferred_element_type=jnp.float32)
    y = y + shift_ref[...]                              # broadcast over lanes
    sig = pl.reciprocal(1.0 + jnp.exp(-y), approx=True)  # sigmoid on EUP slot
    o_ref[0] = (y * sig).astype(o_ref.dtype)             # SiLU, bf16 store


def _choose_col_tile(m, cap=4096):
    """Largest lane tile <= cap that divides m (multiple of 128 when tiling)."""
    if m <= cap:
        return m, m
    for tm in (8192, 4096, 2048, 1024, 512, 256, 128):
        if tm <= cap and m % tm == 0:
            return tm, m
    tm = min(cap, 4096)                          # rare fallback: pad columns
    return tm, ((m + tm - 1) // tm) * tm


def _fused_conv_bn_silu(x_km, wmat, shift, *, tm_cap=4096):
    """x_km: (N, K, M) bf16, wmat: (Cout, K) bf16, shift: (Cout, 1) f32
    -> (N, Cout, M) bf16."""
    n, k, m = x_km.shape
    cout = wmat.shape[0]
    tm, m_pad = _choose_col_tile(m, tm_cap)
    if m_pad != m:
        x_km = jnp.pad(x_km, ((0, 0), (0, 0), (0, m_pad - m)))

    # v7x megacore: ensure the parallel grid has >= 2 steps when possible.
    if n * (m_pad // tm) < 2 and tm % 256 == 0:
        tm //= 2

    grid = (n, m_pad // tm)
    flops = 2 * n * m_pad * k * cout
    bytes_accessed = (n * k * m_pad * 2          # bf16 activations in
                      + cout * k * 2             # bf16 weights
                      + cout * 4                 # f32 shift
                      + n * cout * m_pad * 2)    # bf16 output
    out = pl.pallas_call(
        _focus_conv_kernel,
        out_shape=jax.ShapeDtypeStruct((n, cout, m_pad), jnp.bfloat16),
        grid_spec=pltpu.PrefetchScalarGridSpec(
            num_scalar_prefetch=0,
            grid=grid,
            in_specs=[
                pl.BlockSpec((1, k, tm), lambda b, j: (b, 0, j)),
                pl.BlockSpec((cout, k), lambda b, j: (0, 0)),
                pl.BlockSpec((cout, 1), lambda b, j: (0, 0)),
            ],
            out_specs=pl.BlockSpec((1, cout, tm), lambda b, j: (b, 0, j)),
        ),
        compiler_params=pltpu.CompilerParams(
            dimension_semantics=("parallel", "parallel")),
        cost_estimate=pl.CostEstimate(
            flops=flops,
            transcendentals=n * m_pad * cout,
            bytes_accessed=bytes_accessed),
    )(x_km, wmat, shift)

    if m_pad != m:
        out = out[:, :, :m]
    return out


# ----------------------------- Focus module --------------------------------

def init_focus_params(key, in_channels, out_channels, ksize=1):
    assert ksize == 1, "this synthetic kernel implements the ksize=1 Focus"
    k_w, k_g, k_b, k_m, k_v = jax.random.split(key, 5)
    cin4 = in_channels * 4
    # Conv2d(4*Cin, Cout, k=1, bias=False) weight: (Cout, 4*Cin, 1, 1)
    bound = 1.0 / (cin4 ** 0.5)
    w = jax.random.uniform(k_w, (out_channels, cin4, 1, 1),
                           minval=-bound, maxval=bound, dtype=jnp.float32)
    # BatchNorm2d(Cout) params (deterministic, non-trivial), eval mode.
    gamma = 1.0 + 0.1 * jax.random.normal(k_g, (out_channels,), jnp.float32)
    beta = 0.1 * jax.random.normal(k_b, (out_channels,), jnp.float32)
    running_mean = 0.05 * jax.random.normal(k_m, (out_channels,), jnp.float32)
    running_var = 1.0 + 0.1 * jax.random.uniform(k_v, (out_channels,),
                                                 dtype=jnp.float32)
    return dict(w=w, gamma=gamma, beta=beta,
                running_mean=running_mean, running_var=running_var)


def focus_forward(params, x_nchw, eps=1e-5):
    """Focus forward.  x_nchw: (N, Cin, H, W) f32 -> (N, Cout, H/2, W/2) bf16."""
    n, c, h, w = x_nchw.shape
    h2, w2 = h // 2, w // 2
    cout = params["w"].shape[0]
    k = 4 * c

    # --- space-to-depth directly into the (N, K, M) bf16 kernel layout.
    # K order = (dh, dw, c)  =>  channel blocks [tl, tr, bl, br].
    xs = x_nchw.reshape(n, c, h2, 2, w2, 2)
    xs = jnp.transpose(xs, (0, 3, 5, 1, 2, 4))        # (n, dh, dw, c, h2, w2)
    x_km = xs.reshape(n, k, h2 * w2).astype(jnp.bfloat16)

    # --- 1x1 conv weight (Cout, 4C); permute K-columns from PyTorch's concat
    # order [tl, bl, tr, br] to our [tl, tr, bl, br].
    w4 = params["w"][:, :, 0, 0]                      # (Cout, 4C) f32
    perm = jnp.concatenate([
        jnp.arange(0 * c, 1 * c),    # tl
        jnp.arange(2 * c, 3 * c),    # tr
        jnp.arange(1 * c, 2 * c),    # bl
        jnp.arange(3 * c, 4 * c),    # br
    ])
    wmat = w4[:, perm]                                # (Cout, K) f32

    # --- fold BatchNorm (eval): scale into weight (f32 multiply), shift apart.
    inv_std = 1.0 / jnp.sqrt(params["running_var"] + eps)
    scale = params["gamma"] * inv_std                 # (Cout,)
    shift = (params["beta"] - params["running_mean"] * scale)[:, None]
    wmat = (wmat * scale[:, None]).astype(jnp.bfloat16)
    shift = shift.astype(jnp.float32)                 # (Cout, 1)

    out3 = _fused_conv_bn_silu(x_km, wmat, shift)     # (N, Cout, M) bf16
    # (N, Cout, H2*W2) -> NCHW with a free reshape (no transpose pass).
    return out3.reshape(n, cout, h2, w2)


# --------------------------------- main -------------------------------------

if __name__ == "__main__":
    key = jax.random.PRNGKey(0)
    k_param, k_x = jax.random.split(key)

    N, CIN, H, W = 2, 4, 16, 16
    COUT = 32

    params = init_focus_params(k_param, CIN, COUT, ksize=1)
    x = jax.random.normal(k_x, (N, CIN, H, W), dtype=jnp.float32)

    fwd = jax.jit(lambda xx: focus_forward(params, xx))
    out = jax.block_until_ready(fwd(x))

    assert out.shape == (N, COUT, H // 2, W // 2), out.shape
    assert bool(jnp.all(jnp.isfinite(out.astype(jnp.float32))))

    # Pure-JAX f32 reference using the original PyTorch slicing/concat order.
    tl = x[..., ::2, ::2]
    bl = x[..., 1::2, ::2]
    tr = x[..., ::2, 1::2]
    br = x[..., 1::2, 1::2]
    xs_ref = jnp.concatenate((tl, bl, tr, br), axis=1)       # (N, 4C, H/2, W/2)
    y = jnp.einsum("nkhw,ok->nohw", xs_ref, params["w"][:, :, 0, 0])
    inv_std = 1.0 / jnp.sqrt(params["running_var"] + 1e-5)
    y = ((y - params["running_mean"][None, :, None, None])
         * (params["gamma"] * inv_std)[None, :, None, None]
         + params["beta"][None, :, None, None])
    ref = y * jax.nn.sigmoid(y)
    out_f32 = out.astype(jnp.float32)
    assert bool(jnp.allclose(out_f32, ref, atol=5e-2, rtol=5e-2)), \
        float(jnp.max(jnp.abs(out_f32 - ref)))

    print("KERNEL_OK")
</pallas_src>

<mosaic_0001>
module attributes {stable_mosaic.version = 11 : i64} {
  func.func @_focus_conv_kernel(%arg0: i32, %arg1: i32, %arg2: memref<1x16x64xbf16, #tpu.memory_space<vmem>>, %arg3: memref<32x16xbf16, #tpu.memory_space<vmem>>, %arg4: memref<32x1xf32, #tpu.memory_space<vmem>>, %arg5: memref<1x32x64xbf16, #tpu.memory_space<vmem>>) attributes {dimension_semantics = [#tpu.dimension_semantics<parallel>, #tpu.dimension_semantics<parallel>], iteration_bounds = array<i64: 2, 1>, scalar_prefetch = 0 : i64, scratch_operands = 0 : i64, tpu.core_type = #tpu.core_type<tc>, window_params = [{transform_indices = @transform_0, window_bounds = array<i64: 1, 16, 64>}, {pipeline_mode = #tpu.pipeline_mode<synchronous>, transform_indices = @transform_1, window_bounds = array<i64: 32, 16>}, {pipeline_mode = #tpu.pipeline_mode<synchronous>, transform_indices = @transform_2, window_bounds = array<i64: 32, 1>}, {transform_indices = @transform_3, window_bounds = array<i64: 1, 32, 64>}]} {
    %c0 = arith.constant 0 : index
    %c0_0 = arith.constant 0 : index
    %0 = vector.load %arg3[%c0, %c0_0] : memref<32x16xbf16, #tpu.memory_space<vmem>>, vector<32x16xbf16>
    %c0_1 = arith.constant 0 : index
    %c0_2 = arith.constant 0 : index
    %c0_3 = arith.constant 0 : index
    %1 = vector.load %arg2[%c0_1, %c0_2, %c0_3] : memref<1x16x64xbf16, #tpu.memory_space<vmem>>, vector<1x16x64xbf16>
    %2 = vector.shape_cast %1 : vector<1x16x64xbf16> to vector<16x64xbf16>
    %cst = arith.constant dense<0.000000e+00> : vector<32x64xf32>
    %3 = tpu.matmul %0, %2, %cst {dimension_numbers = #tpu.dot_dimension_numbers<[1], [0], [0], [1], [0, 0, 1, 1], [], []>} : vector<32x16xbf16>, vector<16x64xbf16>, vector<32x64xf32> -> vector<32x64xf32>
    %c0_4 = arith.constant 0 : index
    %c0_5 = arith.constant 0 : index
    %4 = vector.load %arg4[%c0_4, %c0_5] : memref<32x1xf32, #tpu.memory_space<vmem>>, vector<32x1xf32>
    %5 = vector.broadcast %4 : vector<32x1xf32> to vector<32x64xf32>
    %6 = arith.addf %3, %5 : vector<32x64xf32>
    %cst_6 = arith.constant 0.000000e+00 : f32
    %7 = vector.broadcast %cst_6 : f32 to vector<32x64xf32>
    %8 = arith.subf %7, %6 : vector<32x64xf32>
    %9 = math.exp %8 : vector<32x64xf32>
    %cst_7 = arith.constant 1.000000e+00 : f32
    %10 = vector.broadcast %cst_7 : f32 to vector<32x64xf32>
    %11 = arith.addf %10, %9 : vector<32x64xf32>
    %12 = tpu.reciprocal %11 {approx = true} : vector<32x64xf32> -> vector<32x64xf32>
    %13 = arith.mulf %6, %12 : vector<32x64xf32>
    %14 = arith.truncf %13 : vector<32x64xf32> to vector<32x64xbf16>
    %c0_8 = arith.constant 0 : index
    %c0_9 = arith.constant 0 : index
    %c0_10 = arith.constant 0 : index
    %15 = vector.load %arg5[%c0_8, %c0_9, %c0_10] : memref<1x32x64xbf16, #tpu.memory_space<vmem>>, vector<1x32x64xbf16>
    %16 = vector.shape_cast %15 : vector<1x32x64xbf16> to vector<32x64xbf16>
    %17 = vector.shape_cast %14 : vector<32x64xbf16> to vector<1x32x64xbf16>
    tpu.vector_store %arg5[%c0_8, %c0_9, %c0_10], %17 {strides = array<i32>} : memref<1x32x64xbf16, #tpu.memory_space<vmem>>, vector<1x32x64xbf16>,
    return
  }
  func.func @transform_0(%arg0: i32, %arg1: i32) -> (i32, i32, i32) {
    %c0_i32 = arith.constant 0 : i32
    %c0_i32_0 = arith.constant 0 : i32
    return %arg0, %c0_i32, %arg1 : i32, i32, i32
  }
  func.func @transform_1(%arg0: i32, %arg1: i32) -> (i32, i32) {
    %c0_i32 = arith.constant 0 : i32
    %c0_i32_0 = arith.constant 0 : i32
    %c0_i32_1 = arith.constant 0 : i32
    return %c0_i32, %c0_i32_0 : i32, i32
  }
  func.func @transform_2(%arg0: i32, %arg1: i32) -> (i32, i32) {
    %c0_i32 = arith.constant 0 : i32
    %c0_i32_0 = arith.constant 0 : i32
    %c0_i32_1 = arith.constant 0 : i32
    return %c0_i32, %c0_i32_0 : i32, i32
  }
  func.func @transform_3(%arg0: i32, %arg1: i32) -> (i32, i32, i32) {
    %c0_i32 = arith.constant 0 : i32
    %c0_i32_0 = arith.constant 0 : i32
    return %arg0, %c0_i32, %arg1 : i32, i32, i32
  }
}

</mosaic_0001>

<llo_original>
// kernel: _lambda_.1
$region0: #{_lambda_.1}
  #allocation0 [shape = 'u32[]', space=smem, size = 0x4, offset = 0x4, fixed_abs, tag = 'smem constant byte address 0x4 - core index']
  #allocation1 [shape = 'u32[144,128]{1,0:T(1,128)}', space=vmem, size = 0x12000, scoped, tag = 'internal scratch']
  %s0 = inlined_call_operand.vmem [shape: bf16[2,16,64], index: 0, kind: input, shape index: {}]
  %s1 = inlined_call_operand.vmem [shape: bf16[32,16], index: 1, kind: input, shape index: {}]
  %s2 = inlined_call_operand.vmem [shape: f32[32,1], index: 2, kind: input, shape index: {}]
  %s3 = inlined_call_operand.vmem [shape: bf16[2,32,64], index: 3, kind: output, shape index: {}]
  %s4 = sld [smem:[#allocation0]]
  $region45: #{_lambda_.1} parent=0
    _
  %s6 = ssub.s32 1, %s4
  %s7 = scalar_select 0, %s6, %s4
  loop: start=0, step=1, limit=4
  $region2: #{_lambda_.1} parent=0 // loop_pre_header
    _
  $region3: #{_lambda_.1} parent=0 // loop_header
    %s9 = sphi 0, %s13
    %p10 = scmp.ge.s32.totalorder %s9, 4
    %s16 = sphi 0, %s28
    %s17 = sphi 0, %s24
    %s18 = sphi 0, %s16
    %s19 = sphi 0, %s17
    %s20 = sphi 0, %s18
    %s21 = sphi 0, %s19
    %s33 = sphi 0, %s35
    %s36 = sphi 0, %s33
    %s37 = sphi 0, %s36
    %s53 = sphi 0, %s37
    %s57 = sphi 0, %s57
    %s59 = sphi 0, %s57
    %s60 = sphi 0, %s59
    %s74 = sphi 0, %s60
    %s78 = sphi 0, %s78
    %s80 = sphi 0, %s78
    %s81 = sphi 0, %s80
    %s95 = sphi 0, %s81
    %s103 = sphi 0, %s105
    %s106 = sphi 0, %s103
    %s107 = sphi 0, %s106
    %s123 = sphi 0, %s107
  $region4: #{_lambda_.1} parent=0 // loop_header_branch
    %12 = sbr.rel (%p10) target = $region8
  $region5: #{_lambda_.1} parent=0 // loop_body
    %s14 = ssub.s32 %s9, 1
    %s15 = ssub.s32 %s9, 2
    %s22 = sadd.s32 1, %s17
    %p23 = scmp.ge.s32.totalorder %s22, 1
    %s24 = scalar_select %p23, 0, %s22
    %s25 = sadd.s32 1, %s16
    %s26 = scalar_select %p23, %s25, %s16
    %p27 = scmp.ge.s32.totalorder %s26, 2
    %s28 = scalar_select %p27, 0, %s26
    %s29 = ssub.s32 %s16, %s28
    %s30 = ssub.s32 %s17, %s24
    %s31 = sor.u32 %s29, %s30
    %p32 = scmp.eq.s32.totalorder %s31, 0
    %s34 = sadd.s32 %s33, 1
    %s35 = scalar_select %p32, %s33, %s34
    %p38 = pneg %p32
    %p39 = scmp.eq.s32.totalorder %s9, 1
    %p40 = por %p38, %p39
    %p41 = scmp.ne.s32.totalorder %s33, %s36
    %p42 = scmp.eq.s32.totalorder %s9, 0
    %p43 = por %p41, %p42
    %p44 = scmp.ne.s32.totalorder %s33, %s36
    %p45 = scmp.eq.s32.totalorder %s14, 1
    %p46 = por %p44, %p45
    %p47 = scmp.ne.s32.totalorder %s36, %s37
    %p48 = scmp.eq.s32.totalorder %s14, 0
    %p49 = por %p47, %p48
    %p50 = scmp.ne.s32.totalorder %s36, %s37
    %p51 = scmp.eq.s32.totalorder %s15, 1
    %p52 = por %p50, %p51
    %p54 = scmp.ne.s32.totalorder %s37, %s53
    %p55 = scmp.eq.s32.totalorder %s15, 0
    %p56 = por %p54, %p55
    %s58 = sadd.s32 %s57, 1
    %p61 = scmp.eq.s32.totalorder %s9, 1
    %p62 = scmp.ne.s32.totalorder %s57, %s59
    %p63 = scmp.eq.s32.totalorder %s9, 0
    %p64 = por %p62, %p63
    %p65 = scmp.ne.s32.totalorder %s57, %s59
    %p66 = scmp.eq.s32.totalorder %s14, 1
    %p67 = por %p65, %p66
    %p68 = scmp.ne.s32.totalorder %s59, %s60
    %p69 = scmp.eq.s32.totalorder %s14, 0
    %p70 = por %p68, %p69
    %p71 = scmp.ne.s32.totalorder %s59, %s60
    %p72 = scmp.eq.s32.totalorder %s15, 1
    %p73 = por %p71, %p72
    %p75 = scmp.ne.s32.totalorder %s60, %s74
    %p76 = scmp.eq.s32.totalorder %s15, 0
    %p77 = por %p75, %p76
    %s79 = sadd.s32 %s78, 1
    %p82 = scmp.eq.s32.totalorder %s9, 1
    %p83 = scmp.ne.s32.totalorder %s78, %s80
    %p84 = scmp.eq.s32.totalorder %s9, 0
    %p85 = por %p83, %p84
    %p86 = scmp.ne.s32.totalorder %s78, %s80
    %p87 = scmp.eq.s32.totalorder %s14, 1
    %p88 = por %p86, %p87
    %p89 = scmp.ne.s32.totalorder %s80, %s81
    %p90 = scmp.eq.s32.totalorder %s14, 0
    %p91 = por %p89, %p90
    %p92 = scmp.ne.s32.totalorder %s80, %s81
    %p93 = scmp.eq.s32.totalorder %s15, 1
    %p94 = por %p92, %p93
    %p96 = scmp.ne.s32.totalorder %s81, %s95
    %p97 = scmp.eq.s32.totalorder %s15, 0
    %p98 = por %p96, %p97
    %s99 = ssub.s32 %s16, %s28
    %s100 = ssub.s32 %s17, %s24
    %s101 = sor.u32 %s99, %s100
    %p102 = scmp.eq.s32.totalorder %s101, 0
    %s104 = sadd.s32 %s103, 1
    %s105 = scalar_select %p102, %s103, %s104
    %p108 = pneg %p102
    %p109 = scmp.eq.s32.totalorder %s9, 1
    %p110 = por %p108, %p109
    %p111 = scmp.ne.s32.totalorder %s103, %s106
    %p112 = scmp.eq.s32.totalorder %s9, 0
    %p113 = por %p111, %p112
    %p114 = scmp.ne.s32.totalorder %s103, %s106
    %p115 = scmp.eq.s32.totalorder %s14, 1
    %p116 = por %p114, %p115
    %p117 = scmp.ne.s32.totalorder %s106, %s107
    %p118 = scmp.eq.s32.totalorder %s14, 0
    %p119 = por %p117, %p118
    %p120 = scmp.ne.s32.totalorder %s106, %s107
    %p121 = scmp.eq.s32.totalorder %s15, 1
    %p122 = por %p120, %p121
    %p124 = scmp.ne.s32.totalorder %s107, %s123
    %p125 = scmp.eq.s32.totalorder %s15, 0
    %p126 = por %p124, %p125
    %p127 = scmp.le.s32.totalorder 1, %s9
    %p128 = scmp.lt.s32.totalorder %s9, 3
    %p129 = pnand %p127, %p128
    %p130 = pneg %p129
    // Predicated region
    $region9: #{_lambda_.1} parent=5 // pred_check
      _
    $region10: #{_lambda_.1} parent=5 // pred_check_branch
      %132 = sbr.rel (%p129) target = $region12
    $region11: #{_lambda_.1} parent=5 // pred_region
      %s133 = ssub.s32 %s9, 1
      // Predicated region
      $region13: #{_lambda_.1} parent=11 // pred_check
        %p134 = pneg %p70
      $region14: #{_lambda_.1} parent=11 // pred_check_branch
        %136 = sbr.rel (%p134) target = $region16
      $region15: #{_lambda_.1} parent=11 // pred_region
        _
      $region16: #{_lambda_.1} parent=11 // pred_fallthru
        _
      // Predicated region
      $region17: #{_lambda_.1} parent=11 // pred_check
        %p137 = pneg %p91
      $region18: #{_lambda_.1} parent=11 // pred_check_branch
        %139 = sbr.rel (%p137) target = $region20
      $region19: #{_lambda_.1} parent=11 // pred_region
        _
      $region20: #{_lambda_.1} parent=11 // pred_fallthru
        _
    $region12: #{_lambda_.1} parent=5 // pred_fallthru
      _
    %p140 = scmp.lt.s32.totalorder %s9, 2
    // Predicated region
    $region21: #{_lambda_.1} parent=5 // pred_check
      %p141 = pneg %p140
    $region22: #{_lambda_.1} parent=5 // pred_check_branch
      %143 = sbr.rel (%p141) target = $region24
    $region23: #{_lambda_.1} parent=5 // pred_region
      // Predicated region
      $region25: #{_lambda_.1} parent=23 // pred_check
        %p144 = pneg %p43
      $region26: #{_lambda_.1} parent=23 // pred_check_branch
        %146 = sbr.rel (%p144) target = $region28
      $region27: #{_lambda_.1} parent=23 // pred_region
        %p147 = scmp.lt.s32.totalorder %s16, 1
        %s148 = scalar_select %p147, %s16, 1
        %p149 = scmp.lt.s32.totalorder %s17, 0
        %s150 = scalar_select %p149, %s17, 0
        %s151 = smul.addr %s148, 2
        %s152 = sadd.s32 %s150, %s151
        %s153 = smul.addr %s152, 4
        %s154 = scalar_lea.vmem %s0, %s153
      $region28: #{_lambda_.1} parent=23 // pred_fallthru
        _
    $region24: #{_lambda_.1} parent=5 // pred_fallthru
      _
    %p155 = scmp.le.s32.totalorder 1, %s9
    %p156 = scmp.lt.s32.totalorder %s9, 3
    %p157 = pnand %p155, %p156
    %p158 = pneg %p157
    // Predicated region
    $region29: #{_lambda_.1} parent=5 // pred_check
      _
    $region30: #{_lambda_.1} parent=5 // pred_check_branch
      %160 = sbr.rel (%p157) target = $region32
    $region31: #{_lambda_.1} parent=5 // pred_region
      %s161 = ssub.s32 %s9, 1
      %p162 = scmp.lt.s32.totalorder %s18, 1
      %s163 = scalar_select %p162, %s18, 1
      %p164 = scmp.lt.s32.totalorder %s19, 0
      %s165 = scalar_select %p164, %s19, 0
      %s166 = smul.addr %s163, 2
      %s167 = sadd.s32 %s165, %s166
      %s168 = smul.addr %s167, 4
      %s169 = scalar_lea.vmem %s0, %s168
      %p170 = pneg %p49
      %p171 = pneg %p46
      %p172 = pneg %p70
      %p173 = pneg %p67
      %p174 = pneg %p91
      %p175 = pneg %p88
      %p176 = pneg %p119
      %p177 = pneg %p116
      %p178 = scmp.lt.s32.totalorder %s18, 1
      %s179 = scalar_select %p178, %s18, 1
      %p180 = scmp.lt.s32.totalorder %s19, 0
      %s181 = scalar_select %p180, %s19, 0
      %s182 = smul.addr %s179, 4
      %s183 = sadd.s32 %s181, %s182
      %s184 = smul.addr %s183, 4
      %s185 = scalar_lea.vmem %s3, %s184
      %p186 = scmp.lt.s32.totalorder %s18, 1
      %s187 = scalar_select %p186, %s18, 1
      %p188 = scmp.lt.s32.totalorder %s19, 0
      %s189 = scalar_select %p188, %s19, 0
      %s190 = smul.addr %s187, 2
      %s191 = sadd.s32 %s189, %s190
      %s192 = smul.addr %s191, 4
      %s193 = scalar_lea.vmem %s0, %s192
      %p194 = scmp.lt.s32.totalorder %s18, 1
      %s195 = scalar_select %p194, %s18, 1
      %p196 = scmp.lt.s32.totalorder %s19, 0
      %s197 = scalar_select %p196, %s19, 0
      %s198 = smul.addr %s195, 4
      %s199 = sadd.s32 %s197, %s198
      %s200 = smul.addr %s199, 4
      %s201 = scalar_lea.vmem %s3, %s200
      %v203 = vld [vmem:[%s1] sm:$0xf]
      %v204 = vld [vmem:[%s1 + $0x4] sm:$0xf]
      %v205 = vld [vmem:[%s1 + $0x8] sm:$0xf]
      %v206 = vld [vmem:[%s1 + $0xc] sm:$0xf]
      %v207 = vld [vmem:[%s193] sm:$0xf]
      %v208 = vld [vmem:[%s193 + $0x4] sm:$0xf]
      %v209 = vld [vmem:[%s2] sm:$0xff]
      %v210 = vld [vmem:[%s2 + $0x8] sm:$0xff]
      %v211 = vld [vmem:[%s2 + $0x10] sm:$0xff]
      %v212 = vld [vmem:[%s2 + $0x18] sm:$0xff]
      %214 = vset.pattern.permute.xlu0 0
      %215 = vperm.xlu0 %214, %v209
      %v216 = vpop.permute.xlu0 %215
      %219 = vset.pattern.permute.xlu0 0
      %220 = vperm.xlu0 %219, %v210
      %v221 = vpop.permute.xlu0 %220
      %224 = vset.pattern.permute.xlu0 0
      %225 = vperm.xlu0 %224, %v211
      %v226 = vpop.permute.xlu0 %225
      %229 = vset.pattern.permute.xlu0 0
      %230 = vperm.xlu0 %229, %v212
      %v231 = vpop.permute.xlu0 %230
      %v237 = vunpack.c.l.b16 %v203
      %v238 = vunpack.c.l.b16 %v204
      %v239 = vunpack.c.l.b16 %v205
      %v240 = vunpack.c.l.b16 %v206
      %v241 = vpack.c.b16 %v238, %v237
      %v242 = vpack.c.b16 %v240, %v239
      %v245 = vunpack.c.l.b16 %v207
      %v246 = vunpack.c.l.b16 %v208
      %v247 = vpack.c.b16 %v246, %v245
      %vm249 = vcmask 130048
      %v251 = vsel %vm249, %v241, 0
      %v254 = vsel %vm249, %v242, 0
      %256 = vmatprep.subr.bf16.mxu0 0
      %257 = vmatpush1.bf16.msra.mxu0 %v247
      %258 = vmatprep.subr.bf16.mxu0 0
      %259 = vmatpush1.bf16.msra.mxu0 0
      %260 = vmatprep.subr.bf16.mxu0 0
      %261 = vmatpush1.bf16.msra.mxu0 0
      %262 = vmatprep.subr.bf16.mxu0 0
      %263 = vmatpush1.bf16.msra.mxu0 0
      %264 = vmatprep.subr.bf16.mxu0 0
      %265 = vmatpush1.bf16.msra.mxu0 0
      %266 = vmatprep.subr.bf16.mxu0 0
      %267 = vmatpush1.bf16.msra.mxu0 0
      %268 = vmatprep.subr.bf16.mxu0 0
      %269 = vmatpush1.bf16.msra.mxu0 0
      %270 = vmatprep.subr.bf16.mxu0 0
      %271 = vmatpush1.bf16.msra.mxu0 0
      %272 = vmatprep.subr.bf16.mxu0 0
      %273 = vmatpush1.bf16.msra.mxu0 0
      %274 = vmatprep.subr.bf16.mxu0 0
      %275 = vmatpush1.bf16.msra.mxu0 0
      %276 = vmatprep.subr.bf16.mxu0 0
      %277 = vmatpush1.bf16.msra.mxu0 0
      %278 = vmatprep.subr.bf16.mxu0 0
      %279 = vmatpush1.bf16.msra.mxu0 0
      %280 = vmatprep.subr.bf16.mxu0 0
      %281 = vmatpush1.bf16.msra.mxu0 0
      %282 = vmatprep.subr.bf16.mxu0 0
      %283 = vmatpush1.bf16.msra.mxu0 0
      %284 = vmatprep.subr.bf16.mxu0 0
      %285 = vmatpush1.bf16.msra.mxu0 0
      %286 = vmatprep.subr.bf16.mxu0 0
      %287 = vmatpush1.bf16.msra.mxu0 0
      %288 = vmatprep.mubr.bf16.mxu0 0
      %289 = vmatmul.mubr.bf16.gmra.mrb[0].mxu0 %v251
      %v290 = vpop.f32.mrb[0].mxu0
      %v291 = vadd.f32 %v216, %v290
      %v292 = vpop.f32.mrb[0].mxu0
      %v293 = vpop.f32.mrb[0].mxu0
      %v294 = vadd.f32 %v221, %v293
      %v295 = vpop.f32.mrb[0].mxu0
      %296 = vmatprep.mubr.bf16.mxu0 0
      %297 = vmatmul.mubr.bf16.gmra.mrb[0].mxu0 %v254
      %v298 = vpop.f32.mrb[0].mxu0
      %v299 = vadd.f32 %v226, %v298
      %v300 = vpop.f32.mrb[0].mxu0
      %v301 = vpop.f32.mrb[0].mxu0
      %v302 = vadd.f32 %v231, %v301
      %v303 = vpop.f32.mrb[0].mxu0
      %304 = vdwg.mxu0
      %v305 = vsub.f32 0.0, %v291
      %v306 = vsub.f32 0.0, %v294
      %v307 = vsub.f32 0.0, %v299
      %v308 = vsub.f32 0.0, %v302
      %v309 = vmul.f32 %v305, 1.442695
      %v310 = vpow.pop %v309
      %v311 = vmul.f32 %v306, 1.442695
      %v312 = vpow.pop %v311
      %v313 = vmul.f32 %v307, 1.442695
      %v314 = vpow.pop %v313
      %v315 = vmul.f32 %v308, 1.442695
      %v316 = vpow.pop %v315
      %v317 = vadd.f32 %v310, 1.0
      %v318 = vadd.f32 %v312, 1.0
      %v319 = vadd.f32 %v314, 1.0
      %v320 = vadd.f32 %v316, 1.0
      %v321 = vrcp.pop %v317
      %v322 = vrcp.pop %v318
      %v323 = vrcp.pop %v319
      %v324 = vrcp.pop %v320
      %v325 = vmul.f32 %v291, %v321
      %v326 = vmul.f32 %v294, %v322
      %v327 = vmul.f32 %v299, %v323
      %v328 = vmul.f32 %v302, %v324
      %v329 = vpack.c.bf16 %v326, %v325
      %v330 = vpack.c.bf16 %v328, %v327
      %v333 = vunpack.c.l.b16 %v329
      %v334 = vunpack.c.h.b16 %v329
      %v335 = vunpack.c.l.b16 %v330
      %v336 = vunpack.c.h.b16 %v330
      %v337 = vpack.c.b16 %v333, %v333
      %v338 = vpack.c.b16 %v334, %v334
      %v339 = vpack.c.b16 %v335, %v335
      %v340 = vpack.c.b16 %v336, %v336
      %vm345 = vcmask 519168
      %346 = vst.msk [vmem:[%s201] sm:$0xf] %vm345, %v337
      %347 = vst.msk [vmem:[%s201 + $0x4] sm:$0xf] %vm345, %v338
      %348 = vst.msk [vmem:[%s201 + $0x8] sm:$0xf] %vm345, %v339
      %349 = vst.msk [vmem:[%s201 + $0xc] sm:$0xf] %vm345, %v340
      %p350 = scmp.lt.s32.totalorder %s18, 1
      %s351 = scalar_select %p350, %s18, 1
      %p352 = scmp.lt.s32.totalorder %s19, 0
      %s353 = scalar_select %p352, %s19, 0
      %s354 = smul.addr %s351, 4
      %s355 = sadd.s32 %s353, %s354
      %s356 = smul.addr %s355, 4
      %s357 = scalar_lea.vmem %s3, %s356
      // Predicated region
      $region33: #{_lambda_.1} parent=31 // pred_check
        %p358 = pneg %p116
      $region34: #{_lambda_.1} parent=31 // pred_check_branch
        %360 = sbr.rel (%p358) target = $region36
      $region35: #{_lambda_.1} parent=31 // pred_region
        _
      $region36: #{_lambda_.1} parent=31 // pred_fallthru
        _
    $region32: #{_lambda_.1} parent=5 // pred_fallthru
      _
    %p361 = scmp.le.s32.totalorder 2, %s9
    // Predicated region
    $region37: #{_lambda_.1} parent=5 // pred_check
      %p362 = pneg %p361
    $region38: #{_lambda_.1} parent=5 // pred_check_branch
      %364 = sbr.rel (%p362) target = $region40
    $region39: #{_lambda_.1} parent=5 // pred_region
      %s365 = ssub.s32 %s9, 2
      // Predicated region
      $region41: #{_lambda_.1} parent=39 // pred_check
        %p366 = pneg %p122
      $region42: #{_lambda_.1} parent=39 // pred_check_branch
        %368 = sbr.rel (%p366) target = $region44
      $region43: #{_lambda_.1} parent=39 // pred_region
        %p369 = scmp.lt.s32.totalorder %s20, 1
        %s370 = scalar_select %p369, %s20, 1
        %p371 = scmp.lt.s32.totalorder %s21, 0
        %s372 = scalar_select %p371, %s21, 0
        %s373 = smul.addr %s370, 4
        %s374 = sadd.s32 %s372, %s373
        %s375 = smul.addr %s374, 4
        %s376 = scalar_lea.vmem %s3, %s375
      $region44: #{_lambda_.1} parent=39 // pred_fallthru
        _
    $region40: #{_lambda_.1} parent=5 // pred_fallthru
      _
  $region6: #{_lambda_.1} parent=0 // loop_footer
    %s13 = sadd.s32 1, %s9
  $region7: #{_lambda_.1} parent=0 // loop_footer_branch
    %8 = sbr.rel target = $region3
  $region8: #{_lambda_.1} parent=0 // loop_exit
    _

</llo_original>
